<compile_context>
chip_gen: v7x
topology: tpu7x:2x2x1
jax: 0.10.0
libtpu: 0.0.40
codegen_flags: <defaults>
</compile_context>

<pallas_src>
from functools import partial

import jax
import jax.numpy as jnp
from jax.experimental import pallas as pl
from jax.experimental.pallas import tpu as pltpu


def _mlp_kernel(x_ref, w1_ref, w2_ref, b2_ref, w3_ref, b3_ref, w4_ref, b4_ref,
                o_ref):
    tb = x_ref.shape[1]
    rep = tb // 128

    def bias(ref):
        b = ref[...]                               # (out, 128) lane-dense slab
        return b if rep == 1 else jnp.tile(b, (1, rep))

    x = x_ref[...]                                 # (4, TB) rows = [pos, vel, act, 1]

    # Layer 1: act column and bias folded into the augmented (12, 4) weight.
    h = jnp.maximum(
        jnp.dot(w1_ref[...], x, preferred_element_type=jnp.float32), 0.0)           # (12, TB)
    h = jnp.maximum(
        jnp.dot(w2_ref[...], h, preferred_element_type=jnp.float32) + bias(b2_ref),
        0.0)                                                                          # (32, TB)
    h = jnp.maximum(
        jnp.dot(w3_ref[...], h, preferred_element_type=jnp.float32) + bias(b3_ref),
        0.0)                                                                          # (64, TB)
    o_ref[...] = (
        jnp.dot(w4_ref[...], h, preferred_element_type=jnp.float32) + bias(b4_ref)
    ).astype(o_ref.dtype)                                                             # (2, TB)


def _choose_tile(batch, cap):
    """Lane-aligned batch tile.  Guarantees >= 2 grid steps once batch >= 256 so
    the 'parallel' grid axis actually splits across v7x's two TensorCores."""
    if batch <= 128:
        return 128
    if batch <= 2 * cap:
        half = -(-batch // 2)
        return ((half + 127) // 128) * 128
    return cap


@partial(jax.jit, static_argnames=("tb_cap",))
def fake_mountaincar_forward(state, act, params, tb_cap=8192):
    """state: (B, 2) f32, act: (B, 1) f32, params: PyTorch-style
    [(W:(out,in), b:(out,))] * 4.  Returns (B, 2) f32."""
    B = state.shape[0]
    (w1, b1), (w2, b2), (w3, b3), (w4, b4) = params

    tb = _choose_tile(B, tb_cap)
    b_pad = -(-B // tb) * tb
    grid = (b_pad // tb,)

    # Fused layout pass (inside this jit): concat state/act/ones, batch to the
    # 128-lane axis, zero-pad to the tile boundary.
    x = jnp.concatenate(
        [state.astype(jnp.float32), act.astype(jnp.float32),
         jnp.ones((B, 1), jnp.float32)], axis=-1)            # (B, 4)
    xt = jnp.pad(x.T, ((0, 0), (0, b_pad - B)))              # (4, B_pad)

    # Fold act column + bias1 into one augmented first-layer weight; pre-
    # broadcast remaining biases to lane-dense (out, 128) slabs.
    w1_aug = jnp.concatenate([w1, b1[:, None]], axis=1)      # (12, 4)
    b2b = jnp.broadcast_to(b2[:, None], (b2.shape[0], 128))
    b3b = jnp.broadcast_to(b3[:, None], (b3.shape[0], 128))
    b4b = jnp.broadcast_to(b4[:, None], (b4.shape[0], 128))

    def batch_spec(rows):
        # batch-tiled: block index advances along the lane (batch) axis
        return pl.BlockSpec((rows, tb), lambda i: (0, i))

    def const_spec(shape):
        # full-array block, same index every step -> stays VMEM-resident
        return pl.BlockSpec(shape, lambda i: (0, 0))

    out_t = pl.pallas_call(
        _mlp_kernel,
        out_shape=jax.ShapeDtypeStruct((2, b_pad), jnp.float32),
        grid=grid,
        in_specs=[
            batch_spec(4),
            const_spec(w1_aug.shape),
            const_spec(w2.shape), const_spec(b2b.shape),
            const_spec(w3.shape), const_spec(b3b.shape),
            const_spec(w4.shape), const_spec(b4b.shape),
        ],
        out_specs=pl.BlockSpec((2, tb), lambda i: (0, i)),
        compiler_params=pltpu.CompilerParams(
            dimension_semantics=("parallel",)),
    )(xt, w1_aug, w2, b2b, w3, b3b, w4, b4b)

    return out_t[:, :B].T                                     # (B, 2)


def init_params(key):
    """Deterministic init matching nn.Linear: W (out, in), b (out,)."""
    dims = [(3, 12), (12, 32), (32, 64), (64, 2)]
    params = []
    for fan_in, fan_out in dims:
        key, kw, kb = jax.random.split(key, 3)
        bound = 1.0 / (fan_in ** 0.5)
        w = jax.random.uniform(kw, (fan_out, fan_in), jnp.float32, -bound, bound)
        b = jax.random.uniform(kb, (fan_out,), jnp.float32, -bound, bound)
        params.append((w, b))
    return params


def reference_forward(state, act, params):
    x = jnp.concatenate([state, act], axis=-1)                # (B, 3)
    (w1, b1), (w2, b2), (w3, b3), (w4, b4) = params
    hp = jax.lax.Precision.HIGHEST
    h = jnp.maximum(jnp.dot(x, w1.T, precision=hp) + b1, 0.0)
    h = jnp.maximum(jnp.dot(h, w2.T, precision=hp) + b2, 0.0)
    h = jnp.maximum(jnp.dot(h, w3.T, precision=hp) + b3, 0.0)
    return jnp.dot(h, w4.T, precision=hp) + b4


# TODO(synk): step()/reset()/phyloss_f() are host-side env bookkeeping (scalar
# clipping / RNG / MSE loss), not part of forward(); left out of the kernel.

if __name__ == "__main__":
    key = jax.random.PRNGKey(0)
    k_state, k_act, k_params = jax.random.split(key, 3)
    params = init_params(k_params)

    # Small batch (single grid step), like env.reset()-style inputs.
    batch = 8
    state = jax.random.uniform(k_state, (batch, 2), jnp.float32) - 0.6
    act = jax.random.uniform(k_act, (batch, 1), jnp.float32, -1.0, 1.0)

    out = jax.block_until_ready(fake_mountaincar_forward(state, act, params))
    ref = reference_forward(state, act, params)
    assert out.shape == (batch, 2)
    assert jnp.allclose(out, ref, atol=1e-5, rtol=1e-5)

    # Larger batch: exercises >= 2 grid steps (v7x megacore path) and the
    # in-kernel lane-tiled bias path (rep > 1), plus zero-padding slice-off.
    batch2 = 384
    k2s, k2a = jax.random.split(jax.random.PRNGKey(1))
    state2 = jax.random.uniform(k2s, (batch2, 2), jnp.float32) - 0.6
    act2 = jax.random.uniform(k2a, (batch2, 1), jnp.float32, -1.0, 1.0)
    out2 = jax.block_until_ready(fake_mountaincar_forward(state2, act2, params))
    ref2 = reference_forward(state2, act2, params)
    assert out2.shape == (batch2, 2)
    assert jnp.allclose(out2, ref2, atol=1e-5, rtol=1e-5)

    print("KERNEL_OK")
</pallas_src>

<mosaic_0001>
module attributes {stable_mosaic.version = 11 : i64} {
  func.func @_mlp_kernel(%arg0: i32, %arg1: memref<4x128xf32, #tpu.memory_space<vmem>>, %arg2: memref<12x4xf32, #tpu.memory_space<vmem>>, %arg3: memref<32x12xf32, #tpu.memory_space<vmem>>, %arg4: memref<32x128xf32, #tpu.memory_space<vmem>>, %arg5: memref<64x32xf32, #tpu.memory_space<vmem>>, %arg6: memref<64x128xf32, #tpu.memory_space<vmem>>, %arg7: memref<2x64xf32, #tpu.memory_space<vmem>>, %arg8: memref<2x128xf32, #tpu.memory_space<vmem>>, %arg9: memref<2x128xf32, #tpu.memory_space<vmem>>) attributes {dimension_semantics = [#tpu.dimension_semantics<parallel>], iteration_bounds = array<i64: 1>, scalar_prefetch = 0 : i64, scratch_operands = 0 : i64, tpu.core_type = #tpu.core_type<tc>, window_params = [{transform_indices = @transform_0, window_bounds = array<i64: 4, 128>}, {pipeline_mode = #tpu.pipeline_mode<synchronous>, transform_indices = @transform_1, window_bounds = array<i64: 12, 4>}, {pipeline_mode = #tpu.pipeline_mode<synchronous>, transform_indices = @transform_2, window_bounds = array<i64: 32, 12>}, {pipeline_mode = #tpu.pipeline_mode<synchronous>, transform_indices = @transform_3, window_bounds = array<i64: 32, 128>}, {pipeline_mode = #tpu.pipeline_mode<synchronous>, transform_indices = @transform_4, window_bounds = array<i64: 64, 32>}, {pipeline_mode = #tpu.pipeline_mode<synchronous>, transform_indices = @transform_5, window_bounds = array<i64: 64, 128>}, {pipeline_mode = #tpu.pipeline_mode<synchronous>, transform_indices = @transform_6, window_bounds = array<i64: 2, 64>}, {pipeline_mode = #tpu.pipeline_mode<synchronous>, transform_indices = @transform_7, window_bounds = array<i64: 2, 128>}, {transform_indices = @transform_8, window_bounds = array<i64: 2, 128>}]} {
    %c0 = arith.constant 0 : index
    %c0_0 = arith.constant 0 : index
    %0 = vector.load %arg1[%c0, %c0_0] : memref<4x128xf32, #tpu.memory_space<vmem>>, vector<4x128xf32>
    %c0_1 = arith.constant 0 : index
    %c0_2 = arith.constant 0 : index
    %1 = vector.load %arg2[%c0_1, %c0_2] : memref<12x4xf32, #tpu.memory_space<vmem>>, vector<12x4xf32>
    %cst = arith.constant dense<0.000000e+00> : vector<12x128xf32>
    %2 = tpu.matmul %1, %0, %cst {dimension_numbers = #tpu.dot_dimension_numbers<[1], [0], [0], [1], [0, 0, 1, 1], [], []>} : vector<12x4xf32>, vector<4x128xf32>, vector<12x128xf32> -> vector<12x128xf32>
    %cst_3 = arith.constant 0.000000e+00 : f32
    %3 = vector.broadcast %cst_3 : f32 to vector<12x128xf32>
    %4 = arith.maximumf %2, %3 : vector<12x128xf32>
    %c0_4 = arith.constant 0 : index
    %c0_5 = arith.constant 0 : index
    %5 = vector.load %arg3[%c0_4, %c0_5] : memref<32x12xf32, #tpu.memory_space<vmem>>, vector<32x12xf32>
    %cst_6 = arith.constant dense<0.000000e+00> : vector<32x128xf32>
    %6 = tpu.matmul %5, %4, %cst_6 {dimension_numbers = #tpu.dot_dimension_numbers<[1], [0], [0], [1], [0, 0, 1, 1], [], []>} : vector<32x12xf32>, vector<12x128xf32>, vector<32x128xf32> -> vector<32x128xf32>
    %c0_7 = arith.constant 0 : index
    %c0_8 = arith.constant 0 : index
    %7 = vector.load %arg4[%c0_7, %c0_8] : memref<32x128xf32, #tpu.memory_space<vmem>>, vector<32x128xf32>
    %8 = arith.addf %6, %7 : vector<32x128xf32>
    %cst_9 = arith.constant 0.000000e+00 : f32
    %9 = vector.broadcast %cst_9 : f32 to vector<32x128xf32>
    %10 = arith.maximumf %8, %9 : vector<32x128xf32>
    %c0_10 = arith.constant 0 : index
    %c0_11 = arith.constant 0 : index
    %11 = vector.load %arg5[%c0_10, %c0_11] : memref<64x32xf32, #tpu.memory_space<vmem>>, vector<64x32xf32>
    %cst_12 = arith.constant dense<0.000000e+00> : vector<64x128xf32>
    %12 = tpu.matmul %11, %10, %cst_12 {dimension_numbers = #tpu.dot_dimension_numbers<[1], [0], [0], [1], [0, 0, 1, 1], [], []>} : vector<64x32xf32>, vector<32x128xf32>, vector<64x128xf32> -> vector<64x128xf32>
    %c0_13 = arith.constant 0 : index
    %c0_14 = arith.constant 0 : index
    %13 = vector.load %arg6[%c0_13, %c0_14] : memref<64x128xf32, #tpu.memory_space<vmem>>, vector<64x128xf32>
    %14 = arith.addf %12, %13 : vector<64x128xf32>
    %cst_15 = arith.constant 0.000000e+00 : f32
    %15 = vector.broadcast %cst_15 : f32 to vector<64x128xf32>
    %16 = arith.maximumf %14, %15 : vector<64x128xf32>
    %c0_16 = arith.constant 0 : index
    %c0_17 = arith.constant 0 : index
    %17 = vector.load %arg7[%c0_16, %c0_17] : memref<2x64xf32, #tpu.memory_space<vmem>>, vector<2x64xf32>
    %cst_18 = arith.constant dense<0.000000e+00> : vector<2x128xf32>
    %18 = tpu.matmul %17, %16, %cst_18 {dimension_numbers = #tpu.dot_dimension_numbers<[1], [0], [0], [1], [0, 0, 1, 1], [], []>} : vector<2x64xf32>, vector<64x128xf32>, vector<2x128xf32> -> vector<2x128xf32>
    %c0_19 = arith.constant 0 : index
    %c0_20 = arith.constant 0 : index
    %19 = vector.load %arg8[%c0_19, %c0_20] : memref<2x128xf32, #tpu.memory_space<vmem>>, vector<2x128xf32>
    %20 = arith.addf %18, %19 : vector<2x128xf32>
    %c0_21 = arith.constant 0 : index
    %c0_22 = arith.constant 0 : index
    %21 = vector.load %arg9[%c0_21, %c0_22] : memref<2x128xf32, #tpu.memory_space<vmem>>, vector<2x128xf32>
    tpu.vector_store %arg9[%c0_21, %c0_22], %20 {strides = array<i32>} : memref<2x128xf32, #tpu.memory_space<vmem>>, vector<2x128xf32>,
    return
  }
  func.func @transform_0(%arg0: i32) -> (i32, i32) {
    %c0_i32 = arith.constant 0 : i32
    %c0_i32_0 = arith.constant 0 : i32
    return %c0_i32, %arg0 : i32, i32
  }
  func.func @transform_1(%arg0: i32) -> (i32, i32) {
    %c0_i32 = arith.constant 0 : i32
    %c0_i32_0 = arith.constant 0 : i32
    %c0_i32_1 = arith.constant 0 : i32
    return %c0_i32, %c0_i32_0 : i32, i32
  }
  func.func @transform_2(%arg0: i32) -> (i32, i32) {
    %c0_i32 = arith.constant 0 : i32
    %c0_i32_0 = arith.constant 0 : i32
    %c0_i32_1 = arith.constant 0 : i32
    return %c0_i32, %c0_i32_0 : i32, i32
  }
  func.func @transform_3(%arg0: i32) -> (i32, i32) {
    %c0_i32 = arith.constant 0 : i32
    %c0_i32_0 = arith.constant 0 : i32
    %c0_i32_1 = arith.constant 0 : i32
    return %c0_i32, %c0_i32_0 : i32, i32
  }
  func.func @transform_4(%arg0: i32) -> (i32, i32) {
    %c0_i32 = arith.constant 0 : i32
    %c0_i32_0 = arith.constant 0 : i32
    %c0_i32_1 = arith.constant 0 : i32
    return %c0_i32, %c0_i32_0 : i32, i32
  }
  func.func @transform_5(%arg0: i32) -> (i32, i32) {
    %c0_i32 = arith.constant 0 : i32
    %c0_i32_0 = arith.constant 0 : i32
    %c0_i32_1 = arith.constant 0 : i32
    return %c0_i32, %c0_i32_0 : i32, i32
  }
  func.func @transform_6(%arg0: i32) -> (i32, i32) {
    %c0_i32 = arith.constant 0 : i32
    %c0_i32_0 = arith.constant 0 : i32
    %c0_i32_1 = arith.constant 0 : i32
    return %c0_i32, %c0_i32_0 : i32, i32
  }
  func.func @transform_7(%arg0: i32) -> (i32, i32) {
    %c0_i32 = arith.constant 0 : i32
    %c0_i32_0 = arith.constant 0 : i32
    %c0_i32_1 = arith.constant 0 : i32
    return %c0_i32, %c0_i32_0 : i32, i32
  }
  func.func @transform_8(%arg0: i32) -> (i32, i32) {
    %c0_i32 = arith.constant 0 : i32
    %c0_i32_0 = arith.constant 0 : i32
    return %c0_i32, %arg0 : i32, i32
  }
}

</mosaic_0001>

<llo_original>
// kernel: fake_mountaincar_forward.1
$region0: #{fake_mountaincar_forward.1}
  #allocation0 [shape = 'u32[]', space=smem, size = 0x4, offset = 0x4, fixed_abs, tag = 'smem constant byte address 0x4 - core index']
  #allocation1 [shape = 'u32[144,128]{1,0:T(1,128)}', space=vmem, size = 0x12000, scoped, tag = 'internal scratch']
  %s0 = inlined_call_operand.vmem [shape: f32[4,128], index: 0, kind: input, shape index: {}]
  %s1 = inlined_call_operand.vmem [shape: f32[12,4], index: 1, kind: input, shape index: {}]
  %s2 = inlined_call_operand.vmem [shape: f32[32,12], index: 2, kind: input, shape index: {}]
  %s3 = inlined_call_operand.vmem [shape: f32[32,128], index: 3, kind: input, shape index: {}]
  %s4 = inlined_call_operand.vmem [shape: f32[64,32], index: 4, kind: input, shape index: {}]
  %s5 = inlined_call_operand.vmem [shape: f32[64,128], index: 5, kind: input, shape index: {}]
  %s6 = inlined_call_operand.vmem [shape: f32[2,64], index: 6, kind: input, shape index: {}]
  %s7 = inlined_call_operand.vmem [shape: f32[2,128], index: 7, kind: input, shape index: {}]
  %s8 = inlined_call_operand.vmem [shape: f32[2,128], index: 8, kind: output, shape index: {}]
  %s9 = sld [smem:[#allocation0]]
  $region42: #{fake_mountaincar_forward.1} parent=0
    _
  %s11 = ssub.s32 1, %s9
  %s12 = scalar_select 0, %s11, %s9
  // Predicated region
  $region2: #{fake_mountaincar_forward.1} parent=0 // pred_check
    _
  $region3: #{fake_mountaincar_forward.1} parent=0 // pred_check_branch
    %14 = sbr.rel (0) target = $region5
  $region4: #{fake_mountaincar_forward.1} parent=0 // pred_region
    _
  $region5: #{fake_mountaincar_forward.1} parent=0 // pred_fallthru
    _
  // Predicated region
  $region6: #{fake_mountaincar_forward.1} parent=0 // pred_check
    _
  $region7: #{fake_mountaincar_forward.1} parent=0 // pred_check_branch
    %16 = sbr.rel (0) target = $region9
  $region8: #{fake_mountaincar_forward.1} parent=0 // pred_region
    _
  $region9: #{fake_mountaincar_forward.1} parent=0 // pred_fallthru
    _
  // Predicated region
  $region10: #{fake_mountaincar_forward.1} parent=0 // pred_check
    _
  $region11: #{fake_mountaincar_forward.1} parent=0 // pred_check_branch
    %18 = sbr.rel (0) target = $region13
  $region12: #{fake_mountaincar_forward.1} parent=0 // pred_region
    _
  $region13: #{fake_mountaincar_forward.1} parent=0 // pred_fallthru
    _
  // Predicated region
  $region14: #{fake_mountaincar_forward.1} parent=0 // pred_check
    _
  $region15: #{fake_mountaincar_forward.1} parent=0 // pred_check_branch
    %20 = sbr.rel (0) target = $region17
  $region16: #{fake_mountaincar_forward.1} parent=0 // pred_region
    _
  $region17: #{fake_mountaincar_forward.1} parent=0 // pred_fallthru
    _
  // Predicated region
  $region18: #{fake_mountaincar_forward.1} parent=0 // pred_check
    _
  $region19: #{fake_mountaincar_forward.1} parent=0 // pred_check_branch
    %22 = sbr.rel (0) target = $region21
  $region20: #{fake_mountaincar_forward.1} parent=0 // pred_region
    _
  $region21: #{fake_mountaincar_forward.1} parent=0 // pred_fallthru
    _
  // Predicated region
  $region22: #{fake_mountaincar_forward.1} parent=0 // pred_check
    _
  $region23: #{fake_mountaincar_forward.1} parent=0 // pred_check_branch
    %24 = sbr.rel (0) target = $region25
  $region24: #{fake_mountaincar_forward.1} parent=0 // pred_region
    _
  $region25: #{fake_mountaincar_forward.1} parent=0 // pred_fallthru
    _
  // Predicated region
  $region26: #{fake_mountaincar_forward.1} parent=0 // pred_check
    _
  $region27: #{fake_mountaincar_forward.1} parent=0 // pred_check_branch
    %26 = sbr.rel (0) target = $region29
  $region28: #{fake_mountaincar_forward.1} parent=0 // pred_region
    _
  $region29: #{fake_mountaincar_forward.1} parent=0 // pred_fallthru
    _
  // Predicated region
  $region30: #{fake_mountaincar_forward.1} parent=0 // pred_check
    _
  $region31: #{fake_mountaincar_forward.1} parent=0 // pred_check_branch
    %28 = sbr.rel (0) target = $region33
  $region32: #{fake_mountaincar_forward.1} parent=0 // pred_region
    _
  $region33: #{fake_mountaincar_forward.1} parent=0 // pred_fallthru
    _
  %v29 = vld [vmem:[%s0] sm:$0xf]
  %v30 = vld [vmem:[%s1] sm:$0xff]
  %v31 = vld [vmem:[%s1 + $0x8] sm:$0xf]
  %vm32 = vcmask 31744
  %v34 = vsel %vm32, %v30, 0
  %v37 = vsel %vm32, %v31, 0
  %vm39 = vcmask 1043456
  %v41 = vsel %vm39, %v29, 0
  %43 = vmatprep.subr.mxu0 0.0
  %44 = vmatpush1.msra.mxu0 %v41
  %45 = vmatprep.subr.mxu0 0.0
  %46 = vmatpush1.msra.mxu0 0.0
  %47 = vmatprep.subr.mxu0 0.0
  %48 = vmatpush1.msra.mxu0 0.0
  %49 = vmatprep.subr.mxu0 0.0
  %50 = vmatpush1.msra.mxu0 0.0
  %51 = vmatprep.subr.mxu0 0.0
  %52 = vmatpush1.msra.mxu0 0.0
  %53 = vmatprep.subr.mxu0 0.0
  %54 = vmatpush1.msra.mxu0 0.0
  %55 = vmatprep.subr.mxu0 0.0
  %56 = vmatpush1.msra.mxu0 0.0
  %57 = vmatprep.subr.mxu0 0.0
  %58 = vmatpush1.msra.mxu0 0.0
  %59 = vmatprep.subr.mxu0 0.0
  %60 = vmatpush1.msra.mxu0 0.0
  %61 = vmatprep.subr.mxu0 0.0
  %62 = vmatpush1.msra.mxu0 0.0
  %63 = vmatprep.subr.mxu0 0.0
  %64 = vmatpush1.msra.mxu0 0.0
  %65 = vmatprep.subr.mxu0 0.0
  %66 = vmatpush1.msra.mxu0 0.0
  %67 = vmatprep.subr.mxu0 0.0
  %68 = vmatpush1.msra.mxu0 0.0
  %69 = vmatprep.subr.mxu0 0.0
  %70 = vmatpush1.msra.mxu0 0.0
  %71 = vmatprep.subr.mxu0 0.0
  %72 = vmatpush1.msra.mxu0 0.0
  %73 = vmatprep.subr.mxu0 0.0
  %74 = vmatpush1.msra.mxu0 0.0
  %75 = vmatprep.subr.mxu0 0.0
  %76 = vmatpush1.msra.mxu0 0.0
  %77 = vmatprep.subr.mxu0 0.0
  %78 = vmatpush1.msra.mxu0 0.0
  %79 = vmatprep.subr.mxu0 0.0
  %80 = vmatpush1.msra.mxu0 0.0
  %81 = vmatprep.subr.mxu0 0.0
  %82 = vmatpush1.msra.mxu0 0.0
  %83 = vmatprep.subr.mxu0 0.0
  %84 = vmatpush1.msra.mxu0 0.0
  %85 = vmatprep.subr.mxu0 0.0
  %86 = vmatpush1.msra.mxu0 0.0
  %87 = vmatprep.subr.mxu0 0.0
  %88 = vmatpush1.msra.mxu0 0.0
  %89 = vmatprep.subr.mxu0 0.0
  %90 = vmatpush1.msra.mxu0 0.0
  %91 = vmatprep.subr.mxu0 0.0
  %92 = vmatpush1.msra.mxu0 0.0
  %93 = vmatprep.subr.mxu0 0.0
  %94 = vmatpush1.msra.mxu0 0.0
  %95 = vmatprep.subr.mxu0 0.0
  %96 = vmatpush1.msra.mxu0 0.0
  %97 = vmatprep.subr.mxu0 0.0
  %98 = vmatpush1.msra.mxu0 0.0
  %99 = vmatprep.subr.mxu0 0.0
  %100 = vmatpush1.msra.mxu0 0.0
  %101 = vmatprep.subr.mxu0 0.0
  %102 = vmatpush1.msra.mxu0 0.0
  %103 = vmatprep.subr.mxu0 0.0
  %104 = vmatpush1.msra.mxu0 0.0
  %105 = vmatprep.subr.mxu0 0.0
  %106 = vmatpush1.msra.mxu0 0.0
  %107 = vmatprep.mubr.f32.mxu0 0.0
  %108 = vmatmul.mubr.f32.gmra.mrb[0].mxu0 %v34
  %v109 = vpop.f32.mrb[0].mxu0
  %v110 = vadd.f32 0.0, %v109
  %v111 = vpop.f32.mrb[0].mxu0
  %112 = vmatprep.mubr.f32.mxu0 0.0
  %113 = vmatmul.mubr.f32.gmra.mrb[0].mxu0 %v37
  %v114 = vpop.f32.mrb[0].mxu0
  %v115 = vadd.f32 0.0, %v114
  %v116 = vpop.f32.mrb[0].mxu0
  %117 = vdwg.mxu0
  %v118 = vmax.f32 %v110, 0.0
  %v119 = vmax.f32 %v115, 0.0
  %v120 = vld [vmem:[%s2] sm:$0xff]
  %v121 = vld [vmem:[%s2 + $0x8] sm:$0xff]
  %v122 = vld [vmem:[%s2 + $0x10] sm:$0xff]
  %v123 = vld [vmem:[%s2 + $0x18] sm:$0xff]
  %v124 = vld [vmem:[%s3] sm:$0xff]
  %v125 = vld [vmem:[%s3 + $0x8] sm:$0xff]
  %v126 = vld [vmem:[%s3 + $0x10] sm:$0xff]
  %v127 = vld [vmem:[%s3 + $0x18] sm:$0xff]
  %vm128 = vcmask 97280
  %v130 = vsel %vm128, %v120, 0
  %v133 = vsel %vm128, %v121, 0
  %v136 = vsel %vm128, %v122, 0
  %v139 = vsel %vm128, %v123, 0
  %v142 = vsel %vm39, %v119, 0
  %144 = vmatprep.subr.mxu0 0.0
  %145 = vmatpush1.msra.mxu0 %v118
  %146 = vmatprep.subr.mxu0 0.0
  %147 = vmatpush1.msra.mxu0 %v142
  %148 = vmatprep.subr.mxu0 0.0
  %149 = vmatpush1.msra.mxu0 0.0
  %150 = vmatprep.subr.mxu0 0.0
  %151 = vmatpush1.msra.mxu0 0.0
  %152 = vmatprep.subr.mxu0 0.0
  %153 = vmatpush1.msra.mxu0 0.0
  %154 = vmatprep.subr.mxu0 0.0
  %155 = vmatpush1.msra.mxu0 0.0
  %156 = vmatprep.subr.mxu0 0.0
  %157 = vmatpush1.msra.mxu0 0.0
  %158 = vmatprep.subr.mxu0 0.0
  %159 = vmatpush1.msra.mxu0 0.0
  %160 = vmatprep.subr.mxu0 0.0
  %161 = vmatpush1.msra.mxu0 0.0
  %162 = vmatprep.subr.mxu0 0.0
  %163 = vmatpush1.msra.mxu0 0.0
  %164 = vmatprep.subr.mxu0 0.0
  %165 = vmatpush1.msra.mxu0 0.0
  %166 = vmatprep.subr.mxu0 0.0
  %167 = vmatpush1.msra.mxu0 0.0
  %168 = vmatprep.subr.mxu0 0.0
  %169 = vmatpush1.msra.mxu0 0.0
  %170 = vmatprep.subr.mxu0 0.0
  %171 = vmatpush1.msra.mxu0 0.0
  %172 = vmatprep.subr.mxu0 0.0
  %173 = vmatpush1.msra.mxu0 0.0
  %174 = vmatprep.subr.mxu0 0.0
  %175 = vmatpush1.msra.mxu0 0.0
  %176 = vmatprep.subr.mxu0 0.0
  %177 = vmatpush1.msra.mxu0 0.0
  %178 = vmatprep.subr.mxu0 0.0
  %179 = vmatpush1.msra.mxu0 0.0
  %180 = vmatprep.subr.mxu0 0.0
  %181 = vmatpush1.msra.mxu0 0.0
  %182 = vmatprep.subr.mxu0 0.0
  %183 = vmatpush1.msra.mxu0 0.0
  %184 = vmatprep.subr.mxu0 0.0
  %185 = vmatpush1.msra.mxu0 0.0
  %186 = vmatprep.subr.mxu0 0.0
  %187 = vmatpush1.msra.mxu0 0.0
  %188 = vmatprep.subr.mxu0 0.0
  %189 = vmatpush1.msra.mxu0 0.0
  %190 = vmatprep.subr.mxu0 0.0
  %191 = vmatpush1.msra.mxu0 0.0
  %192 = vmatprep.subr.mxu0 0.0
  %193 = vmatpush1.msra.mxu0 0.0
  %194 = vmatprep.subr.mxu0 0.0
  %195 = vmatpush1.msra.mxu0 0.0
  %196 = vmatprep.subr.mxu0 0.0
  %197 = vmatpush1.msra.mxu0 0.0
  %198 = vmatprep.subr.mxu0 0.0
  %199 = vmatpush1.msra.mxu0 0.0
  %200 = vmatprep.subr.mxu0 0.0
  %201 = vmatpush1.msra.mxu0 0.0
  %202 = vmatprep.subr.mxu0 0.0
  %203 = vmatpush1.msra.mxu0 0.0
  %204 = vmatprep.subr.mxu0 0.0
  %205 = vmatpush1.msra.mxu0 0.0
  %206 = vmatprep.subr.mxu0 0.0
  %207 = vmatpush1.msra.mxu0 0.0
  %208 = vmatprep.mubr.f32.mxu0 0.0
  %209 = vmatmul.mubr.f32.gmra.mrb[0].mxu0 %v130
  %v210 = vpop.f32.mrb[0].mxu0
  %v211 = vadd.f32 %v124, %v210
  %v212 = vpop.f32.mrb[0].mxu0
  %213 = vmatprep.mubr.f32.mxu0 0.0
  %214 = vmatmul.mubr.f32.gmra.mrb[0].mxu0 %v133
  %v215 = vpop.f32.mrb[0].mxu0
  %v216 = vadd.f32 %v125, %v215
  %v217 = vpop.f32.mrb[0].mxu0
  %218 = vmatprep.mubr.f32.mxu0 0.0
  %219 = vmatmul.mubr.f32.gmra.mrb[0].mxu0 %v136
  %v220 = vpop.f32.mrb[0].mxu0
  %v221 = vadd.f32 %v126, %v220
  %v222 = vpop.f32.mrb[0].mxu0
  %223 = vmatprep.mubr.f32.mxu0 0.0
  %224 = vmatmul.mubr.f32.gmra.mrb[0].mxu0 %v139
  %v225 = vpop.f32.mrb[0].mxu0
  %v226 = vadd.f32 %v127, %v225
  %v227 = vpop.f32.mrb[0].mxu0
  %228 = vdwg.mxu0
  %v229 = vmax.f32 %v211, 0.0
  %v230 = vmax.f32 %v216, 0.0
  %v231 = vmax.f32 %v221, 0.0
  %v232 = vmax.f32 %v226, 0.0
  %v233 = vld [vmem:[%s4] sm:$0xff]
  %v234 = vld [vmem:[%s4 + $0x8] sm:$0xff]
  %v235 = vld [vmem:[%s4 + $0x10] sm:$0xff]
  %v236 = vld [vmem:[%s4 + $0x18] sm:$0xff]
  %v237 = vld [vmem:[%s4 + $0x20] sm:$0xff]
  %v238 = vld [vmem:[%s4 + $0x28] sm:$0xff]
  %v239 = vld [vmem:[%s4 + $0x30] sm:$0xff]
  %v240 = vld [vmem:[%s4 + $0x38] sm:$0xff]
  %v241 = vld [vmem:[%s5] sm:$0xff]
  %v242 = vld [vmem:[%s5 + $0x8] sm:$0xff]
  %v243 = vld [vmem:[%s5 + $0x10] sm:$0xff]
  %v244 = vld [vmem:[%s5 + $0x18] sm:$0xff]
  %v245 = vld [vmem:[%s5 + $0x20] sm:$0xff]
  %v246 = vld [vmem:[%s5 + $0x28] sm:$0xff]
  %v247 = vld [vmem:[%s5 + $0x30] sm:$0xff]
  %v248 = vld [vmem:[%s5 + $0x38] sm:$0xff]
  %vm249 = vcmask 261120
  %v251 = vsel %vm249, %v233, 0
  %v254 = vsel %vm249, %v234, 0
  %v257 = vsel %vm249, %v235, 0
  %v260 = vsel %vm249, %v236, 0
  %v263 = vsel %vm249, %v237, 0
  %v266 = vsel %vm249, %v238, 0
  %v269 = vsel %vm249, %v239, 0
  %v272 = vsel %vm249, %v240, 0
  %274 = vmatprep.subr.mxu0 0.0
  %275 = vmatpush1.msra.mxu0 %v229
  %276 = vmatprep.subr.mxu0 0.0
  %277 = vmatpush1.msra.mxu0 %v230
  %278 = vmatprep.subr.mxu0 0.0
  %279 = vmatpush1.msra.mxu0 %v231
  %280 = vmatprep.subr.mxu0 0.0
  %281 = vmatpush1.msra.mxu0 %v232
  %282 = vmatprep.subr.mxu0 0.0
  %283 = vmatpush1.msra.mxu0 0.0
  %284 = vmatprep.subr.mxu0 0.0
  %285 = vmatpush1.msra.mxu0 0.0
  %286 = vmatprep.subr.mxu0 0.0
  %287 = vmatpush1.msra.mxu0 0.0
  %288 = vmatprep.subr.mxu0 0.0
  %289 = vmatpush1.msra.mxu0 0.0
  %290 = vmatprep.subr.mxu0 0.0
  %291 = vmatpush1.msra.mxu0 0.0
  %292 = vmatprep.subr.mxu0 0.0
  %293 = vmatpush1.msra.mxu0 0.0
  %294 = vmatprep.subr.mxu0 0.0
  %295 = vmatpush1.msra.mxu0 0.0
  %296 = vmatprep.subr.mxu0 0.0
  %297 = vmatpush1.msra.mxu0 0.0
  %298 = vmatprep.subr.mxu0 0.0
  %299 = vmatpush1.msra.mxu0 0.0
  %300 = vmatprep.subr.mxu0 0.0
  %301 = vmatpush1.msra.mxu0 0.0
  %302 = vmatprep.subr.mxu0 0.0
  %303 = vmatpush1.msra.mxu0 0.0
  %304 = vmatprep.subr.mxu0 0.0
  %305 = vmatpush1.msra.mxu0 0.0
  %306 = vmatprep.subr.mxu0 0.0
  %307 = vmatpush1.msra.mxu0 0.0
  %308 = vmatprep.subr.mxu0 0.0
  %309 = vmatpush1.msra.mxu0 0.0
  %310 = vmatprep.subr.mxu0 0.0
  %311 = vmatpush1.msra.mxu0 0.0
  %312 = vmatprep.subr.mxu0 0.0
  %313 = vmatpush1.msra.mxu0 0.0
  %314 = vmatprep.subr.mxu0 0.0
  %315 = vmatpush1.msra.mxu0 0.0
  %316 = vmatprep.subr.mxu0 0.0
  %317 = vmatpush1.msra.mxu0 0.0
  %318 = vmatprep.subr.mxu0 0.0
  %319 = vmatpush1.msra.mxu0 0.0
  %320 = vmatprep.subr.mxu0 0.0
  %321 = vmatpush1.msra.mxu0 0.0
  %322 = vmatprep.subr.mxu0 0.0
  %323 = vmatpush1.msra.mxu0 0.0
  %324 = vmatprep.subr.mxu0 0.0
  %325 = vmatpush1.msra.mxu0 0.0
  %326 = vmatprep.subr.mxu0 0.0
  %327 = vmatpush1.msra.mxu0 0.0
  %328 = vmatprep.subr.mxu0 0.0
  %329 = vmatpush1.msra.mxu0 0.0
  %330 = vmatprep.subr.mxu0 0.0
  %331 = vmatpush1.msra.mxu0 0.0
  %332 = vmatprep.subr.mxu0 0.0
  %333 = vmatpush1.msra.mxu0 0.0
  %334 = vmatprep.subr.mxu0 0.0
  %335 = vmatpush1.msra.mxu0 0.0
  %336 = vmatprep.subr.mxu0 0.0
  %337 = vmatpush1.msra.mxu0 0.0
  %338 = vmatprep.mubr.f32.mxu0 0.0
  %339 = vmatmul.mubr.f32.gmra.mrb[0].mxu0 %v251
  %v340 = vpop.f32.mrb[0].mxu0
  %v341 = vadd.f32 %v241, %v340
  %v342 = vpop.f32.mrb[0].mxu0
  %343 = vmatprep.mubr.f32.mxu0 0.0
  %344 = vmatmul.mubr.f32.gmra.mrb[0].mxu0 %v254
  %v345 = vpop.f32.mrb[0].mxu0
  %v346 = vadd.f32 %v242, %v345
  %v347 = vpop.f32.mrb[0].mxu0
  %348 = vmatprep.mubr.f32.mxu0 0.0
  %349 = vmatmul.mubr.f32.gmra.mrb[0].mxu0 %v257
  %v350 = vpop.f32.mrb[0].mxu0
  %v351 = vadd.f32 %v243, %v350
  %v352 = vpop.f32.mrb[0].mxu0
  %353 = vmatprep.mubr.f32.mxu0 0.0
  %354 = vmatmul.mubr.f32.gmra.mrb[0].mxu0 %v260
  %v355 = vpop.f32.mrb[0].mxu0
  %v356 = vadd.f32 %v244, %v355
  %v357 = vpop.f32.mrb[0].mxu0
  %358 = vmatprep.mubr.f32.mxu0 0.0
  %359 = vmatmul.mubr.f32.gmra.mrb[0].mxu0 %v263
  %v360 = vpop.f32.mrb[0].mxu0
  %v361 = vadd.f32 %v245, %v360
  %v362 = vpop.f32.mrb[0].mxu0
  %363 = vmatprep.mubr.f32.mxu0 0.0
  %364 = vmatmul.mubr.f32.gmra.mrb[0].mxu0 %v266
  %v365 = vpop.f32.mrb[0].mxu0
  %v366 = vadd.f32 %v246, %v365
  %v367 = vpop.f32.mrb[0].mxu0
  %368 = vmatprep.mubr.f32.mxu0 0.0
  %369 = vmatmul.mubr.f32.gmra.mrb[0].mxu0 %v269
  %v370 = vpop.f32.mrb[0].mxu0
  %v371 = vadd.f32 %v247, %v370
  %v372 = vpop.f32.mrb[0].mxu0
  %373 = vmatprep.mubr.f32.mxu0 0.0
  %374 = vmatmul.mubr.f32.gmra.mrb[0].mxu0 %v272
  %v375 = vpop.f32.mrb[0].mxu0
  %v376 = vadd.f32 %v248, %v375
  %v377 = vpop.f32.mrb[0].mxu0
  %378 = vdwg.mxu0
  %v379 = vmax.f32 %v341, 0.0
  %v380 = vmax.f32 %v346, 0.0
  %v381 = vmax.f32 %v351, 0.0
  %v382 = vmax.f32 %v356, 0.0
  %v383 = vmax.f32 %v361, 0.0
  %v384 = vmax.f32 %v366, 0.0
  %v385 = vmax.f32 %v371, 0.0
  %v386 = vmax.f32 %v376, 0.0
  %v387 = vld [vmem:[%s6] sm:$0x3]
  %v388 = vld [vmem:[%s7] sm:$0x3]
  %vm389 = vcmask 523264
  %v391 = vsel %vm389, %v387, 0
  %393 = vmatprep.subr.mxu0 0.0
  %394 = vmatpush1.msra.mxu0 %v379
  %395 = vmatprep.subr.mxu0 0.0
  %396 = vmatpush1.msra.mxu0 %v380
  %397 = vmatprep.subr.mxu0 0.0
  %398 = vmatpush1.msra.mxu0 %v381
  %399 = vmatprep.subr.mxu0 0.0
  %400 = vmatpush1.msra.mxu0 %v382
  %401 = vmatprep.subr.mxu0 0.0
  %402 = vmatpush1.msra.mxu0 %v383
  %403 = vmatprep.subr.mxu0 0.0
  %404 = vmatpush1.msra.mxu0 %v384
  %405 = vmatprep.subr.mxu0 0.0
  %406 = vmatpush1.msra.mxu0 %v385
  %407 = vmatprep.subr.mxu0 0.0
  %408 = vmatpush1.msra.mxu0 %v386
  %409 = vmatprep.subr.mxu0 0.0
  %410 = vmatpush1.msra.mxu0 0.0
  %411 = vmatprep.subr.mxu0 0.0
  %412 = vmatpush1.msra.mxu0 0.0
  %413 = vmatprep.subr.mxu0 0.0
  %414 = vmatpush1.msra.mxu0 0.0
  %415 = vmatprep.subr.mxu0 0.0
  %416 = vmatpush1.msra.mxu0 0.0
  %417 = vmatprep.subr.mxu0 0.0
  %418 = vmatpush1.msra.mxu0 0.0
  %419 = vmatprep.subr.mxu0 0.0
  %420 = vmatpush1.msra.mxu0 0.0
  %421 = vmatprep.subr.mxu0 0.0
  %422 = vmatpush1.msra.mxu0 0.0
  %423 = vmatprep.subr.mxu0 0.0
  %424 = vmatpush1.msra.mxu0 0.0
  %425 = vmatprep.subr.mxu0 0.0
  %426 = vmatpush1.msra.mxu0 0.0
  %427 = vmatprep.subr.mxu0 0.0
  %428 = vmatpush1.msra.mxu0 0.0
  %429 = vmatprep.subr.mxu0 0.0
  %430 = vmatpush1.msra.mxu0 0.0
  %431 = vmatprep.subr.mxu0 0.0
  %432 = vmatpush1.msra.mxu0 0.0
  %433 = vmatprep.subr.mxu0 0.0
  %434 = vmatpush1.msra.mxu0 0.0
  %435 = vmatprep.subr.mxu0 0.0
  %436 = vmatpush1.msra.mxu0 0.0
  %437 = vmatprep.subr.mxu0 0.0
  %438 = vmatpush1.msra.mxu0 0.0
  %439 = vmatprep.subr.mxu0 0.0
  %440 = vmatpush1.msra.mxu0 0.0
  %441 = vmatprep.subr.mxu0 0.0
  %442 = vmatpush1.msra.mxu0 0.0
  %443 = vmatprep.subr.mxu0 0.0
  %444 = vmatpush1.msra.mxu0 0.0
  %445 = vmatprep.subr.mxu0 0.0
  %446 = vmatpush1.msra.mxu0 0.0
  %447 = vmatprep.subr.mxu0 0.0
  %448 = vmatpush1.msra.mxu0 0.0
  %449 = vmatprep.subr.mxu0 0.0
  %450 = vmatpush1.msra.mxu0 0.0
  %451 = vmatprep.subr.mxu0 0.0
  %452 = vmatpush1.msra.mxu0 0.0
  %453 = vmatprep.subr.mxu0 0.0
  %454 = vmatpush1.msra.mxu0 0.0
  %455 = vmatprep.subr.mxu0 0.0
  %456 = vmatpush1.msra.mxu0 0.0
  %457 = vmatprep.mubr.f32.mxu0 0.0
  %458 = vmatmul.mubr.f32.gmra.mrb[0].mxu0 %v391
  %v459 = vpop.f32.mrb[0].mxu0
  %v460 = vadd.f32 %v388, %v459
  %v461 = vpop.f32.mrb[0].mxu0
  %462 = vdwg.mxu0
  %463 = vst [vmem:[%s8] sm:$0x3] %v460
  // Predicated region
  $region34: #{fake_mountaincar_forward.1} parent=0 // pred_check
    _
  $region35: #{fake_mountaincar_forward.1} parent=0 // pred_check_branch
    %465 = sbr.rel (0) target = $region37
  $region36: #{fake_mountaincar_forward.1} parent=0 // pred_region
    _
  $region37: #{fake_mountaincar_forward.1} parent=0 // pred_fallthru
    _
  // Predicated region
  $region38: #{fake_mountaincar_forward.1} parent=0 // pred_check
    _
  $region39: #{fake_mountaincar_forward.1} parent=0 // pred_check_branch
    %467 = sbr.rel (0) target = $region41
  $region40: #{fake_mountaincar_forward.1} parent=0 // pred_region
    _
  $region41: #{fake_mountaincar_forward.1} parent=0 // pred_fallthru
    _

</llo_original>
